<compile_context>
chip_gen: v7x
topology: tpu7x:2x2x1
jax: 0.10.0
libtpu: 0.0.40
codegen_flags: <defaults>
</compile_context>

<pallas_src>
import functools

import numpy as np

import jax
import jax.numpy as jnp
from jax.experimental import pallas as pl
from jax.experimental.pallas import tpu as pltpu


# ----------------------------- Pallas kernel ------------------------------- #

def _owt_kernel(filt_ref, norm_ref, x_ref, *rest, kernel_size, levels, normalize):
    """All DWT levels for one row tile.

    filt_ref : SMEM (2, K)   row 0 = scaling filter h, row 1 = wavelet filter g
    norm_ref : SMEM (1,)     sum(h) (only read when normalize=True)
    x_ref    : VMEM (TR, L)  row tile of the flattened (b*c, L) signal
    rest     : E_0..E_{levels-1} phase matrices (VMEM, bf16, constant blocks)
               followed by a_0, d_0, ..., a_{levels-1}, d_{levels-1} outputs.
    """
    K = kernel_size
    half_k = K // 2
    p = (K - 2) // 2
    e_refs = rest[:levels]
    out_refs = rest[levels:]

    # Hoist all 2*K filter scalars out of the tap loops (one SMEM read each).
    h = [filt_ref[0, k] for k in range(K)]
    g = [filt_ref[1, k] for k in range(K)]

    cur = x_ref[...]                                      # (TR, L) float32
    for lvl in range(levels):
        n = cur.shape[-1]
        lout = n // 2
        m = lout + p

        # ---- fused antireflect pad + even/odd deinterleave (MXU) ----------- #
        # E is a constant (n, 2m) matrix with entries in {-1, 0, 1, 2}:
        #   cur @ E = [even phase | odd phase] of the antireflect-padded signal.
        # Split cur into three bf16 planes so the bf16 MXU path is f32-exact.
        s = e_refs[lvl][...]                              # (n, 2m) bfloat16
        hi = cur.astype(jnp.bfloat16)
        r1 = cur - hi.astype(jnp.float32)
        mid = r1.astype(jnp.bfloat16)
        lo = (r1 - mid.astype(jnp.float32)).astype(jnp.bfloat16)
        eo = (jnp.dot(hi, s, preferred_element_type=jnp.float32)
              + jnp.dot(mid, s, preferred_element_type=jnp.float32)
              + jnp.dot(lo, s, preferred_element_type=jnp.float32))
        e = eo[:, :m]                                     # even phase (TR, m)
        o = eo[:, m:]                                     # odd  phase (TR, m)

        # ---- stride-2 depthwise conv as polyphase taps (VPU, f32) ---------- #
        #   out[r, t] = sum_j e[r, t+j]*w[2j] + o[r, t+j]*w[2j+1]
        acc_a = jnp.zeros(e.shape[:-1] + (lout,), jnp.float32)
        acc_d = jnp.zeros_like(acc_a)
        for j in range(half_k):                           # K//2 taps, unrolled
            ev = e[:, j:j + lout]
            od = o[:, j:j + lout]
            acc_a = acc_a + ev * h[2 * j] + od * h[2 * j + 1]
            acc_d = acc_d + ev * g[2 * j] + od * g[2 * j + 1]

        if normalize:
            acc_a = acc_a / norm_ref[0]

        out_refs[2 * lvl][...] = acc_a
        out_refs[2 * lvl + 1][...] = acc_d
        cur = acc_a                 # next level consumes the (normalized) approx


# ------------------------------- glue (JAX) -------------------------------- #

def _phase_matrix(n, p):
    """Constant (n, 2*m) matrix: signal of length n -> [even | odd] phases of the
    antireflect-padded (p each side) signal.  Entries in {-1, 0, 1, 2} (bf16-exact)."""
    m = n // 2 + p
    mat = np.zeros((n, 2 * m), np.float32)
    for phase in (0, 1):
        for k in range(m):
            i = 2 * k + phase                    # index into the padded signal
            col = phase * m + k
            if i < p:                            # left pad: 2*x[0] - x[p - i]
                mat[0, col] += 2.0
                mat[p - i, col] -= 1.0
            elif i < p + n:                      # interior: x[i - p]
                mat[i - p, col] += 1.0
            else:                                # right pad: 2*x[n-1] - x[2n+p-2-i]
                mat[n - 1, col] += 2.0
                mat[2 * n + p - 2 - i, col] -= 1.0
    return mat


def _choose_row_tile(R, L):
    """Row-tile (multiple of 8) sized so the double-buffered per-step working set
    stays well inside the scoped-VMEM defaults on v5e/v6e/v7x."""
    if R <= 256:
        return R                                  # full dim -> always legal
    budget = 8 * 1024 * 1024                      # bytes of row-dependent data
    rows = max(8, budget // max(1, 24 * L))       # ~6 live f32 copies of level 0
    tr = 256
    while tr > 8 and tr > rows:
        tr //= 2
    return tr


def orthonormal_wavelet_block_1d(signal, scaling_kernel, *, kernel_size, levels=1,
                                 normalize_approximation=False):
    """Forward pass matching OrthonormalWaveletBlock1D.forward (return_filters=False).

    signal         : (b, c, L) float32
    scaling_kernel : (K,) float32  (the h filter; the module stores it as (1,1,K))
    returns        : (signals, details) lists of (b, c, L / 2**(i+1)) arrays
    """
    assert signal.ndim == 3
    b, c, L = signal.shape
    K = kernel_size
    assert (K - 2) % 2 == 0, "kernel size must be even"
    p = (K - 2) // 2
    assert L % (2 ** levels) == 0, "signal length must be divisible by 2**levels"
    assert (L // (2 ** (levels - 1))) > p, "signal too short for this kernel/levels"

    h = scaling_kernel.reshape(-1).astype(jnp.float32)
    signs = (1.0 - 2.0 * (jnp.arange(K) % 2)).astype(jnp.float32)     # (-1)**r
    g = jnp.flip(h) * signs
    filt = jnp.stack([h, g], axis=0)                                  # (2, K)
    norm = jnp.sum(h).reshape(1).astype(jnp.float32)                  # (1,)

    R = b * c
    x = signal.reshape(R, L).astype(jnp.float32)
    TR = _choose_row_tile(R, L)
    grid = (pl.cdiv(R, TR),)

    # Constant pad+deinterleave matrices, one per level (bf16-exact entries).
    e_mats = [jnp.asarray(_phase_matrix(L // (2 ** lvl), p), dtype=jnp.bfloat16)
              for lvl in range(levels)]

    in_specs = [
        pl.BlockSpec(memory_space=pltpu.MemorySpace.SMEM),            # filters
        pl.BlockSpec(memory_space=pltpu.MemorySpace.SMEM),            # norm scalar
        pl.BlockSpec((TR, L), lambda i: (i, 0)),                      # signal rows
    ]
    for mat in e_mats:                                                # constant blocks
        in_specs.append(pl.BlockSpec(mat.shape, lambda i: (0, 0)))

    out_specs, out_shapes = [], []
    for lvl in range(levels):
        lout = L // (2 ** (lvl + 1))
        for _ in range(2):                                            # approx, detail
            out_specs.append(pl.BlockSpec((TR, lout), lambda i: (i, 0)))
            out_shapes.append(jax.ShapeDtypeStruct((R, lout), jnp.float32))

    kern = functools.partial(_owt_kernel, kernel_size=K, levels=levels,
                             normalize=bool(normalize_approximation))
    outs = pl.pallas_call(
        kern,
        grid=grid,
        in_specs=in_specs,
        out_specs=tuple(out_specs),
        out_shape=tuple(out_shapes),
        compiler_params=pltpu.CompilerParams(
            dimension_semantics=("parallel",),         # shard row tiles across cores
            vmem_limit_bytes=32 * 1024 * 1024,
        ),
    )(filt, norm, x, *e_mats)

    signals, details = [], []
    for lvl in range(levels):
        lout = L // (2 ** (lvl + 1))
        signals.append(outs[2 * lvl].reshape(b, c, lout))
        details.append(outs[2 * lvl + 1].reshape(b, c, lout))
    return signals, details


# ----------------------------- pure-JAX reference --------------------------- #

def _pad_antireflect(x, p):
    left = 2.0 * x[..., :1] - x[..., 1:p + 1][..., ::-1]
    right = 2.0 * x[..., -1:] - x[..., -p - 1:-1][..., ::-1]
    return jnp.concatenate([left, x, right], axis=-1)


def _ref_forward(signal, h, *, kernel_size, levels):
    K = kernel_size
    p = (K - 2) // 2
    signs = (1.0 - 2.0 * (jnp.arange(K) % 2)).astype(jnp.float32)
    g = jnp.flip(h) * signs
    signals, details = [], []
    x = signal
    for _ in range(levels):
        xp = _pad_antireflect(x, p)
        lout = x.shape[-1] // 2
        a = jnp.stack([(xp[..., 2 * t:2 * t + K] * h).sum(-1) for t in range(lout)], axis=-1)
        d = jnp.stack([(xp[..., 2 * t:2 * t + K] * g).sum(-1) for t in range(lout)], axis=-1)
        signals.append(a)
        details.append(d)
        x = a
    return signals, details


# ---------------------------------- main ------------------------------------ #

if __name__ == "__main__":
    key = jax.random.PRNGKey(0)
    k_sig, k_filt = jax.random.split(key)

    b, c, L = 2, 4, 16
    kernel_size = 6          # even; (K-2) % 4 == 0 -> invertible variant
    levels = 2

    signal = jax.random.normal(k_sig, (b, c, L), dtype=jnp.float32)

    # Deterministic kaiming_uniform_(a=sqrt(5)) equivalent for a (1,1,K) tensor:
    # fan_in = K, gain = sqrt(2/(1+5)), bound = gain*sqrt(3/fan_in) = sqrt(1/K).
    bound = (1.0 / kernel_size) ** 0.5
    scaling_kernel = jax.random.uniform(k_filt, (kernel_size,), dtype=jnp.float32,
                                        minval=-bound, maxval=bound)

    signals, details = orthonormal_wavelet_block_1d(
        signal, scaling_kernel, kernel_size=kernel_size, levels=levels)
    jax.block_until_ready(signals)
    jax.block_until_ready(details)

    ref_s, ref_d = _ref_forward(signal, scaling_kernel,
                                kernel_size=kernel_size, levels=levels)
    for lvl in range(levels):
        assert signals[lvl].shape == (b, c, L // (2 ** (lvl + 1)))
        assert details[lvl].shape == (b, c, L // (2 ** (lvl + 1)))
        assert jnp.allclose(signals[lvl], ref_s[lvl], atol=1e-4, rtol=1e-4)
        assert jnp.allclose(details[lvl], ref_d[lvl], atol=1e-4, rtol=1e-4)

    print("KERNEL_OK")
</pallas_src>

<mosaic_0001>
module attributes {stable_mosaic.version = 11 : i64} {
  func.func @_owt_kernel(%arg0: i32, %arg1: memref<2x6xf32, #tpu.memory_space<smem>>, %arg2: memref<1xf32, #tpu.memory_space<smem>>, %arg3: memref<8x16xf32, #tpu.memory_space<vmem>>, %arg4: memref<16x20xbf16, #tpu.memory_space<vmem>>, %arg5: memref<8x12xbf16, #tpu.memory_space<vmem>>, %arg6: memref<8x8xf32, #tpu.memory_space<vmem>>, %arg7: memref<8x8xf32, #tpu.memory_space<vmem>>, %arg8: memref<8x4xf32, #tpu.memory_space<vmem>>, %arg9: memref<8x4xf32, #tpu.memory_space<vmem>>) attributes {dimension_semantics = [#tpu.dimension_semantics<parallel>], iteration_bounds = array<i64: 1>, scalar_prefetch = 0 : i64, scratch_operands = 0 : i64, tpu.core_type = #tpu.core_type<tc>, window_params = [{transform_indices = @transform_0, window_bounds = array<i64: 2, 6>}, {transform_indices = @transform_1, window_bounds = array<i64: 1>}, {transform_indices = @transform_2, window_bounds = array<i64: 8, 16>}, {pipeline_mode = #tpu.pipeline_mode<synchronous>, transform_indices = @transform_3, window_bounds = array<i64: 16, 20>}, {pipeline_mode = #tpu.pipeline_mode<synchronous>, transform_indices = @transform_4, window_bounds = array<i64: 8, 12>}, {transform_indices = @transform_5, window_bounds = array<i64: 8, 8>}, {transform_indices = @transform_6, window_bounds = array<i64: 8, 8>}, {transform_indices = @transform_7, window_bounds = array<i64: 8, 4>}, {transform_indices = @transform_8, window_bounds = array<i64: 8, 4>}]} {
    %c0 = arith.constant 0 : index
    %c0_0 = arith.constant 0 : index
    %0 = memref.load %arg1[%c0, %c0_0] : memref<2x6xf32, #tpu.memory_space<smem>>
    %c0_1 = arith.constant 0 : index
    %c1 = arith.constant 1 : index
    %1 = memref.load %arg1[%c0_1, %c1] : memref<2x6xf32, #tpu.memory_space<smem>>
    %c0_2 = arith.constant 0 : index
    %c2 = arith.constant 2 : index
    %2 = memref.load %arg1[%c0_2, %c2] : memref<2x6xf32, #tpu.memory_space<smem>>
    %c0_3 = arith.constant 0 : index
    %c3 = arith.constant 3 : index
    %3 = memref.load %arg1[%c0_3, %c3] : memref<2x6xf32, #tpu.memory_space<smem>>
    %c0_4 = arith.constant 0 : index
    %c4 = arith.constant 4 : index
    %4 = memref.load %arg1[%c0_4, %c4] : memref<2x6xf32, #tpu.memory_space<smem>>
    %c0_5 = arith.constant 0 : index
    %c5 = arith.constant 5 : index
    %5 = memref.load %arg1[%c0_5, %c5] : memref<2x6xf32, #tpu.memory_space<smem>>
    %c1_6 = arith.constant 1 : index
    %c0_7 = arith.constant 0 : index
    %6 = memref.load %arg1[%c1_6, %c0_7] : memref<2x6xf32, #tpu.memory_space<smem>>
    %c1_8 = arith.constant 1 : index
    %c1_9 = arith.constant 1 : index
    %7 = memref.load %arg1[%c1_8, %c1_9] : memref<2x6xf32, #tpu.memory_space<smem>>
    %c1_10 = arith.constant 1 : index
    %c2_11 = arith.constant 2 : index
    %8 = memref.load %arg1[%c1_10, %c2_11] : memref<2x6xf32, #tpu.memory_space<smem>>
    %c1_12 = arith.constant 1 : index
    %c3_13 = arith.constant 3 : index
    %9 = memref.load %arg1[%c1_12, %c3_13] : memref<2x6xf32, #tpu.memory_space<smem>>
    %c1_14 = arith.constant 1 : index
    %c4_15 = arith.constant 4 : index
    %10 = memref.load %arg1[%c1_14, %c4_15] : memref<2x6xf32, #tpu.memory_space<smem>>
    %c1_16 = arith.constant 1 : index
    %c5_17 = arith.constant 5 : index
    %11 = memref.load %arg1[%c1_16, %c5_17] : memref<2x6xf32, #tpu.memory_space<smem>>
    %c0_18 = arith.constant 0 : index
    %c0_19 = arith.constant 0 : index
    %12 = vector.load %arg3[%c0_18, %c0_19] : memref<8x16xf32, #tpu.memory_space<vmem>>, vector<8x16xf32>
    %c0_20 = arith.constant 0 : index
    %c0_21 = arith.constant 0 : index
    %13 = vector.load %arg4[%c0_20, %c0_21] : memref<16x20xbf16, #tpu.memory_space<vmem>>, vector<16x20xbf16>
    %14 = arith.truncf %12 : vector<8x16xf32> to vector<8x16xbf16>
    %15 = arith.extf %14 : vector<8x16xbf16> to vector<8x16xf32>
    %16 = arith.subf %12, %15 : vector<8x16xf32>
    %17 = arith.truncf %16 : vector<8x16xf32> to vector<8x16xbf16>
    %18 = arith.extf %17 : vector<8x16xbf16> to vector<8x16xf32>
    %19 = arith.subf %16, %18 : vector<8x16xf32>
    %20 = arith.truncf %19 : vector<8x16xf32> to vector<8x16xbf16>
    %cst = arith.constant dense<0.000000e+00> : vector<8x20xf32>
    %21 = tpu.matmul %14, %13, %cst {dimension_numbers = #tpu.dot_dimension_numbers<[1], [0], [0], [1], [0, 0, 1, 1], [], []>} : vector<8x16xbf16>, vector<16x20xbf16>, vector<8x20xf32> -> vector<8x20xf32>
    %cst_22 = arith.constant dense<0.000000e+00> : vector<8x20xf32>
    %22 = tpu.matmul %17, %13, %cst_22 {dimension_numbers = #tpu.dot_dimension_numbers<[1], [0], [0], [1], [0, 0, 1, 1], [], []>} : vector<8x16xbf16>, vector<16x20xbf16>, vector<8x20xf32> -> vector<8x20xf32>
    %23 = arith.addf %21, %22 : vector<8x20xf32>
    %cst_23 = arith.constant dense<0.000000e+00> : vector<8x20xf32>
    %24 = tpu.matmul %20, %13, %cst_23 {dimension_numbers = #tpu.dot_dimension_numbers<[1], [0], [0], [1], [0, 0, 1, 1], [], []>} : vector<8x16xbf16>, vector<16x20xbf16>, vector<8x20xf32> -> vector<8x20xf32>
    %25 = arith.addf %23, %24 : vector<8x20xf32>
    %26 = vector.extract_strided_slice %25 {offsets = [0, 0], sizes = [8, 10], strides = [1, 1]} : vector<8x20xf32> to vector<8x10xf32>
    %27 = vector.extract_strided_slice %25 {offsets = [0, 10], sizes = [8, 10], strides = [1, 1]} : vector<8x20xf32> to vector<8x10xf32>
    %cst_24 = arith.constant 0.000000e+00 : f32
    %28 = vector.broadcast %cst_24 : f32 to vector<8x8xf32>
    %cst_25 = arith.constant 0.000000e+00 : f32
    %29 = vector.broadcast %cst_25 : f32 to vector<8x8xf32>
    %30 = vector.extract_strided_slice %26 {offsets = [0, 0], sizes = [8, 8], strides = [1, 1]} : vector<8x10xf32> to vector<8x8xf32>
    %31 = vector.extract_strided_slice %27 {offsets = [0, 0], sizes = [8, 8], strides = [1, 1]} : vector<8x10xf32> to vector<8x8xf32>
    %32 = vector.broadcast %0 : f32 to vector<8x8xf32>
    %33 = arith.mulf %30, %32 : vector<8x8xf32>
    %34 = arith.addf %28, %33 : vector<8x8xf32>
    %35 = vector.broadcast %1 : f32 to vector<8x8xf32>
    %36 = arith.mulf %31, %35 : vector<8x8xf32>
    %37 = arith.addf %34, %36 : vector<8x8xf32>
    %38 = vector.broadcast %6 : f32 to vector<8x8xf32>
    %39 = arith.mulf %30, %38 : vector<8x8xf32>
    %40 = arith.addf %29, %39 : vector<8x8xf32>
    %41 = vector.broadcast %7 : f32 to vector<8x8xf32>
    %42 = arith.mulf %31, %41 : vector<8x8xf32>
    %43 = arith.addf %40, %42 : vector<8x8xf32>
    %44 = vector.extract_strided_slice %26 {offsets = [0, 1], sizes = [8, 8], strides = [1, 1]} : vector<8x10xf32> to vector<8x8xf32>
    %45 = vector.extract_strided_slice %27 {offsets = [0, 1], sizes = [8, 8], strides = [1, 1]} : vector<8x10xf32> to vector<8x8xf32>
    %46 = vector.broadcast %2 : f32 to vector<8x8xf32>
    %47 = arith.mulf %44, %46 : vector<8x8xf32>
    %48 = arith.addf %37, %47 : vector<8x8xf32>
    %49 = vector.broadcast %3 : f32 to vector<8x8xf32>
    %50 = arith.mulf %45, %49 : vector<8x8xf32>
    %51 = arith.addf %48, %50 : vector<8x8xf32>
    %52 = vector.broadcast %8 : f32 to vector<8x8xf32>
    %53 = arith.mulf %44, %52 : vector<8x8xf32>
    %54 = arith.addf %43, %53 : vector<8x8xf32>
    %55 = vector.broadcast %9 : f32 to vector<8x8xf32>
    %56 = arith.mulf %45, %55 : vector<8x8xf32>
    %57 = arith.addf %54, %56 : vector<8x8xf32>
    %58 = vector.extract_strided_slice %26 {offsets = [0, 2], sizes = [8, 8], strides = [1, 1]} : vector<8x10xf32> to vector<8x8xf32>
    %59 = vector.extract_strided_slice %27 {offsets = [0, 2], sizes = [8, 8], strides = [1, 1]} : vector<8x10xf32> to vector<8x8xf32>
    %60 = vector.broadcast %4 : f32 to vector<8x8xf32>
    %61 = arith.mulf %58, %60 : vector<8x8xf32>
    %62 = arith.addf %51, %61 : vector<8x8xf32>
    %63 = vector.broadcast %5 : f32 to vector<8x8xf32>
    %64 = arith.mulf %59, %63 : vector<8x8xf32>
    %65 = arith.addf %62, %64 : vector<8x8xf32>
    %66 = vector.broadcast %10 : f32 to vector<8x8xf32>
    %67 = arith.mulf %58, %66 : vector<8x8xf32>
    %68 = arith.addf %57, %67 : vector<8x8xf32>
    %69 = vector.broadcast %11 : f32 to vector<8x8xf32>
    %70 = arith.mulf %59, %69 : vector<8x8xf32>
    %71 = arith.addf %68, %70 : vector<8x8xf32>
    %c0_26 = arith.constant 0 : index
    %c0_27 = arith.constant 0 : index
    %72 = vector.load %arg6[%c0_26, %c0_27] : memref<8x8xf32, #tpu.memory_space<vmem>>, vector<8x8xf32>
    tpu.vector_store %arg6[%c0_26, %c0_27], %65 {strides = array<i32>} : memref<8x8xf32, #tpu.memory_space<vmem>>, vector<8x8xf32>,
    %c0_28 = arith.constant 0 : index
    %c0_29 = arith.constant 0 : index
    %73 = vector.load %arg7[%c0_28, %c0_29] : memref<8x8xf32, #tpu.memory_space<vmem>>, vector<8x8xf32>
    tpu.vector_store %arg7[%c0_28, %c0_29], %71 {strides = array<i32>} : memref<8x8xf32, #tpu.memory_space<vmem>>, vector<8x8xf32>,
    %c0_30 = arith.constant 0 : index
    %c0_31 = arith.constant 0 : index
    %74 = vector.load %arg5[%c0_30, %c0_31] : memref<8x12xbf16, #tpu.memory_space<vmem>>, vector<8x12xbf16>
    %75 = arith.truncf %65 : vector<8x8xf32> to vector<8x8xbf16>
    %76 = arith.extf %75 : vector<8x8xbf16> to vector<8x8xf32>
    %77 = arith.subf %65, %76 : vector<8x8xf32>
    %78 = arith.truncf %77 : vector<8x8xf32> to vector<8x8xbf16>
    %79 = arith.extf %78 : vector<8x8xbf16> to vector<8x8xf32>
    %80 = arith.subf %77, %79 : vector<8x8xf32>
    %81 = arith.truncf %80 : vector<8x8xf32> to vector<8x8xbf16>
    %cst_32 = arith.constant dense<0.000000e+00> : vector<8x12xf32>
    %82 = tpu.matmul %75, %74, %cst_32 {dimension_numbers = #tpu.dot_dimension_numbers<[1], [0], [0], [1], [0, 0, 1, 1], [], []>} : vector<8x8xbf16>, vector<8x12xbf16>, vector<8x12xf32> -> vector<8x12xf32>
    %cst_33 = arith.constant dense<0.000000e+00> : vector<8x12xf32>
    %83 = tpu.matmul %78, %74, %cst_33 {dimension_numbers = #tpu.dot_dimension_numbers<[1], [0], [0], [1], [0, 0, 1, 1], [], []>} : vector<8x8xbf16>, vector<8x12xbf16>, vector<8x12xf32> -> vector<8x12xf32>
    %84 = arith.addf %82, %83 : vector<8x12xf32>
    %cst_34 = arith.constant dense<0.000000e+00> : vector<8x12xf32>
    %85 = tpu.matmul %81, %74, %cst_34 {dimension_numbers = #tpu.dot_dimension_numbers<[1], [0], [0], [1], [0, 0, 1, 1], [], []>} : vector<8x8xbf16>, vector<8x12xbf16>, vector<8x12xf32> -> vector<8x12xf32>
    %86 = arith.addf %84, %85 : vector<8x12xf32>
    %87 = vector.extract_strided_slice %86 {offsets = [0, 0], sizes = [8, 6], strides = [1, 1]} : vector<8x12xf32> to vector<8x6xf32>
    %88 = vector.extract_strided_slice %86 {offsets = [0, 6], sizes = [8, 6], strides = [1, 1]} : vector<8x12xf32> to vector<8x6xf32>
    %cst_35 = arith.constant 0.000000e+00 : f32
    %89 = vector.broadcast %cst_35 : f32 to vector<8x4xf32>
    %cst_36 = arith.constant 0.000000e+00 : f32
    %90 = vector.broadcast %cst_36 : f32 to vector<8x4xf32>
    %91 = vector.extract_strided_slice %87 {offsets = [0, 0], sizes = [8, 4], strides = [1, 1]} : vector<8x6xf32> to vector<8x4xf32>
    %92 = vector.extract_strided_slice %88 {offsets = [0, 0], sizes = [8, 4], strides = [1, 1]} : vector<8x6xf32> to vector<8x4xf32>
    %93 = vector.broadcast %0 : f32 to vector<8x4xf32>
    %94 = arith.mulf %91, %93 : vector<8x4xf32>
    %95 = arith.addf %89, %94 : vector<8x4xf32>
    %96 = vector.broadcast %1 : f32 to vector<8x4xf32>
    %97 = arith.mulf %92, %96 : vector<8x4xf32>
    %98 = arith.addf %95, %97 : vector<8x4xf32>
    %99 = vector.broadcast %6 : f32 to vector<8x4xf32>
    %100 = arith.mulf %91, %99 : vector<8x4xf32>
    %101 = arith.addf %90, %100 : vector<8x4xf32>
    %102 = vector.broadcast %7 : f32 to vector<8x4xf32>
    %103 = arith.mulf %92, %102 : vector<8x4xf32>
    %104 = arith.addf %101, %103 : vector<8x4xf32>
    %105 = vector.extract_strided_slice %87 {offsets = [0, 1], sizes = [8, 4], strides = [1, 1]} : vector<8x6xf32> to vector<8x4xf32>
    %106 = vector.extract_strided_slice %88 {offsets = [0, 1], sizes = [8, 4], strides = [1, 1]} : vector<8x6xf32> to vector<8x4xf32>
    %107 = vector.broadcast %2 : f32 to vector<8x4xf32>
    %108 = arith.mulf %105, %107 : vector<8x4xf32>
    %109 = arith.addf %98, %108 : vector<8x4xf32>
    %110 = vector.broadcast %3 : f32 to vector<8x4xf32>
    %111 = arith.mulf %106, %110 : vector<8x4xf32>
    %112 = arith.addf %109, %111 : vector<8x4xf32>
    %113 = vector.broadcast %8 : f32 to vector<8x4xf32>
    %114 = arith.mulf %105, %113 : vector<8x4xf32>
    %115 = arith.addf %104, %114 : vector<8x4xf32>
    %116 = vector.broadcast %9 : f32 to vector<8x4xf32>
    %117 = arith.mulf %106, %116 : vector<8x4xf32>
    %118 = arith.addf %115, %117 : vector<8x4xf32>
    %119 = vector.extract_strided_slice %87 {offsets = [0, 2], sizes = [8, 4], strides = [1, 1]} : vector<8x6xf32> to vector<8x4xf32>
    %120 = vector.extract_strided_slice %88 {offsets = [0, 2], sizes = [8, 4], strides = [1, 1]} : vector<8x6xf32> to vector<8x4xf32>
    %121 = vector.broadcast %4 : f32 to vector<8x4xf32>
    %122 = arith.mulf %119, %121 : vector<8x4xf32>
    %123 = arith.addf %112, %122 : vector<8x4xf32>
    %124 = vector.broadcast %5 : f32 to vector<8x4xf32>
    %125 = arith.mulf %120, %124 : vector<8x4xf32>
    %126 = arith.addf %123, %125 : vector<8x4xf32>
    %127 = vector.broadcast %10 : f32 to vector<8x4xf32>
    %128 = arith.mulf %119, %127 : vector<8x4xf32>
    %129 = arith.addf %118, %128 : vector<8x4xf32>
    %130 = vector.broadcast %11 : f32 to vector<8x4xf32>
    %131 = arith.mulf %120, %130 : vector<8x4xf32>
    %132 = arith.addf %129, %131 : vector<8x4xf32>
    %c0_37 = arith.constant 0 : index
    %c0_38 = arith.constant 0 : index
    %133 = vector.load %arg8[%c0_37, %c0_38] : memref<8x4xf32, #tpu.memory_space<vmem>>, vector<8x4xf32>
    tpu.vector_store %arg8[%c0_37, %c0_38], %126 {strides = array<i32>} : memref<8x4xf32, #tpu.memory_space<vmem>>, vector<8x4xf32>,
    %c0_39 = arith.constant 0 : index
    %c0_40 = arith.constant 0 : index
    %134 = vector.load %arg9[%c0_39, %c0_40] : memref<8x4xf32, #tpu.memory_space<vmem>>, vector<8x4xf32>
    tpu.vector_store %arg9[%c0_39, %c0_40], %132 {strides = array<i32>} : memref<8x4xf32, #tpu.memory_space<vmem>>, vector<8x4xf32>,
    return
  }
  func.func @transform_0(%arg0: i32) -> (i32, i32) {
    %c0_i32 = arith.constant 0 : i32
    %c0_i32_0 = arith.constant 0 : i32
    %c0_i32_1 = arith.constant 0 : i32
    return %c0_i32, %c0_i32_0 : i32, i32
  }
  func.func @transform_1(%arg0: i32) -> i32 {
    %c0_i32 = arith.constant 0 : i32
    %c0_i32_0 = arith.constant 0 : i32
    return %c0_i32 : i32
  }
  func.func @transform_2(%arg0: i32) -> (i32, i32) {
    %c0_i32 = arith.constant 0 : i32
    %c0_i32_0 = arith.constant 0 : i32
    return %arg0, %c0_i32 : i32, i32
  }
  func.func @transform_3(%arg0: i32) -> (i32, i32) {
    %c0_i32 = arith.constant 0 : i32
    %c0_i32_0 = arith.constant 0 : i32
    %c0_i32_1 = arith.constant 0 : i32
    return %c0_i32, %c0_i32_0 : i32, i32
  }
  func.func @transform_4(%arg0: i32) -> (i32, i32) {
    %c0_i32 = arith.constant 0 : i32
    %c0_i32_0 = arith.constant 0 : i32
    %c0_i32_1 = arith.constant 0 : i32
    return %c0_i32, %c0_i32_0 : i32, i32
  }
  func.func @transform_5(%arg0: i32) -> (i32, i32) {
    %c0_i32 = arith.constant 0 : i32
    %c0_i32_0 = arith.constant 0 : i32
    return %arg0, %c0_i32 : i32, i32
  }
  func.func @transform_6(%arg0: i32) -> (i32, i32) {
    %c0_i32 = arith.constant 0 : i32
    %c0_i32_0 = arith.constant 0 : i32
    return %arg0, %c0_i32 : i32, i32
  }
  func.func @transform_7(%arg0: i32) -> (i32, i32) {
    %c0_i32 = arith.constant 0 : i32
    %c0_i32_0 = arith.constant 0 : i32
    return %arg0, %c0_i32 : i32, i32
  }
  func.func @transform_8(%arg0: i32) -> (i32, i32) {
    %c0_i32 = arith.constant 0 : i32
    %c0_i32_0 = arith.constant 0 : i32
    return %arg0, %c0_i32 : i32, i32
  }
}

</mosaic_0001>

<llo_original>
// kernel: tpu_custom_call.1
$region0: #{tpu_custom_call.1}
  #allocation0 [shape = 'u32[]', space=smem, size = 0x4, offset = 0x4, fixed_abs, tag = 'smem constant byte address 0x4 - core index']
  #allocation1 [shape = 'u32[144,128]{1,0:T(1,128)}', space=vmem, size = 0x12000, scoped, tag = 'internal scratch']
  #allocation2 [shape = 'f32[1]{0:T(128)S(6)}', space=smem, size = 0x200, scoped, tag = 'scoped memory for tpu_custom_call.1']
  %s0 = inlined_call_operand.vmem [shape: f32[2,6], index: 0, kind: input, shape index: {}]
  %s1 = inlined_call_operand.<no memory space> [shape: f32[1], index: 1, kind: input, shape index: {}]
  %s2 = inlined_call_operand.hbm [shape: f32[8,16], index: 2, kind: input, shape index: {}]
  %s3 = inlined_call_operand.vmem [shape: bf16[16,20], index: 3, kind: input, shape index: {}]
  %s4 = inlined_call_operand.vmem [shape: bf16[8,12], index: 4, kind: input, shape index: {}]
  %s5 = inlined_call_operand.hbm [shape: f32[8,8], index: 5, kind: output, shape index: {0}]
  %s6 = inlined_call_operand.hbm [shape: f32[8,8], index: 6, kind: output, shape index: {1}]
  %s7 = inlined_call_operand.vmem [shape: f32[8,4], index: 7, kind: output, shape index: {2}]
  %s8 = inlined_call_operand.vmem [shape: f32[8,4], index: 8, kind: output, shape index: {3}]
  %9 = xla_tuple %s5, %s6, %s7, %s8
  %s10 = sld [smem:[#allocation0]]
  $region62: #{tpu_custom_call.1} parent=0
    _
  %s12 = ssub.s32 1, %s10
  %s13 = scalar_select 0, %s12, %s10
  %14 = sst [smem:[#allocation2]] %s1
  $region1: #{tpu_custom_call.1} parent=0
    #allocation3 [shape = 'u8[1024]{0}', space=smem, size = 0x400, scoped, tag = 'input window, operand 0, single buffered']
    #allocation4 [shape = 's32[1]{0}', space=sflag, size = 0x4, scoped, tag = 'scoped memory for tpu_custom_call.1']
    #allocation5 [shape = 's32[1]{0}', space=sflag, size = 0x4, scoped, tag = 'scoped memory for tpu_custom_call.1']
    #allocation6 [shape = 's32[1]{0}', space=sflag, size = 0x4, scoped, tag = 'scoped memory for tpu_custom_call.1']
    #allocation7 [shape = 'u8[4096]{0}', space=vmem, size = 0x1000, scoped, tag = 'input window, operand 2, single buffered']
    #allocation8 [shape = 'u8[4096]{0}', space=vmem, size = 0x1000, scoped, tag = 'output window, operand 0, single buffered']
    #allocation9 [shape = 'u8[4096]{0}', space=vmem, size = 0x1000, scoped, tag = 'output window, operand 1, single buffered']
    #allocation10 [shape = 's32[1]{0}', space=sflag, size = 0x4, scoped, tag = 'scoped memory for tpu_custom_call.1']
    %15 = vsyncpa [#allocation6], 0
    %16 = vsyncpa [#allocation4], 0
    %17 = vsyncpa [#allocation5], 0
    %18 = vsyncpa [#allocation10], 0
    // Predicated region
    $region2: #{tpu_custom_call.1} parent=1 // pred_check
      _
    $region3: #{tpu_custom_call.1} parent=1 // pred_check_branch
      %20 = sbr.rel (0) target = $region5
    $region4: #{tpu_custom_call.1} parent=1 // pred_region
      %s22 = ssub.s32 32, 32
      %23 = vsyncadd [#allocation6], %s22
      %s25 = sshll.u32 %s0, 4
      %s26 = int_to_ptr.vmem [resolvable:$true] %s25
      %28 = dma.vmem_to_smem %s26, 32, [#allocation3], [#allocation6]
    $region5: #{tpu_custom_call.1} parent=1 // pred_fallthru
      _
    // Predicated region
    $region6: #{tpu_custom_call.1} parent=1 // pred_check
      _
    $region7: #{tpu_custom_call.1} parent=1 // pred_check_branch
      %30 = sbr.rel (0) target = $region9
    $region8: #{tpu_custom_call.1} parent=1 // pred_region
      _
    $region9: #{tpu_custom_call.1} parent=1 // pred_fallthru
      _
    // Predicated region
    $region10: #{tpu_custom_call.1} parent=1 // pred_check
      _
    $region11: #{tpu_custom_call.1} parent=1 // pred_check_branch
      %32 = sbr.rel (0) target = $region13
    $region12: #{tpu_custom_call.1} parent=1 // pred_region
      %s34 = ssub.s32 128, 128
      %35 = vsyncadd [#allocation4], %s34
      %s37 = sshll.u32 [#allocation7], 4
      %s38 = int_to_ptr.vmem [resolvable:$true] %s37
      %40 = dma.hbm_to_vmem [thread:$0]  %s2, 128, %s38, [#allocation4]
    $region13: #{tpu_custom_call.1} parent=1 // pred_fallthru
      _
    // Predicated region
    $region14: #{tpu_custom_call.1} parent=1 // pred_check
      _
    $region15: #{tpu_custom_call.1} parent=1 // pred_check_branch
      %42 = sbr.rel (0) target = $region17
    $region16: #{tpu_custom_call.1} parent=1 // pred_region
      _
    $region17: #{tpu_custom_call.1} parent=1 // pred_fallthru
      _
    // Predicated region
    $region18: #{tpu_custom_call.1} parent=1 // pred_check
      _
    $region19: #{tpu_custom_call.1} parent=1 // pred_check_branch
      %44 = sbr.rel (0) target = $region21
    $region20: #{tpu_custom_call.1} parent=1 // pred_region
      _
    $region21: #{tpu_custom_call.1} parent=1 // pred_fallthru
      _
    // Predicated region
    $region22: #{tpu_custom_call.1} parent=1 // pred_check
      _
    $region23: #{tpu_custom_call.1} parent=1 // pred_check_branch
      %46 = sbr.rel (0) target = $region25
    $region24: #{tpu_custom_call.1} parent=1 // pred_region
      %47 = dma.done [#allocation6], 32
    $region25: #{tpu_custom_call.1} parent=1 // pred_fallthru
      _
    // Predicated region
    $region26: #{tpu_custom_call.1} parent=1 // pred_check
      _
    $region27: #{tpu_custom_call.1} parent=1 // pred_check_branch
      %49 = sbr.rel (0) target = $region29
    $region28: #{tpu_custom_call.1} parent=1 // pred_region
      %50 = dma.done [#allocation4], 128
    $region29: #{tpu_custom_call.1} parent=1 // pred_fallthru
      _
    %51 = sfence
    %s53 = sld [smem:[#allocation3]]
    %s54 = sld [smem:[#allocation3 + $0x1]]
    %s55 = sld [smem:[#allocation3 + $0x2]]
    %s56 = sld [smem:[#allocation3 + $0x3]]
    %s57 = sld [smem:[#allocation3 + $0x4]]
    %s58 = sld [smem:[#allocation3 + $0x5]]
    %s59 = sld [smem:[#allocation3 + $0x80]]
    %s60 = sld [smem:[#allocation3 + $0x81]]
    %s61 = sld [smem:[#allocation3 + $0x82]]
    %s62 = sld [smem:[#allocation3 + $0x83]]
    %s63 = sld [smem:[#allocation3 + $0x84]]
    %s64 = sld [smem:[#allocation3 + $0x85]]
    %v65 = vld [vmem:[#allocation7] sm:$0xff]
    %v66 = vld [vmem:[%s3] sm:$0xf]
    %v67 = vld [vmem:[%s3 + $0x4] sm:$0xf]
    %v68 = vpack.c.bf16 %v65, %v65
    %v69 = vunpack.c.l.bf16 %v68
    %v70 = vsub.f32 %v65, %v69
    %v71 = vpack.c.bf16 %v70, %v70
    %v72 = vunpack.c.l.bf16 %v71
    %v73 = vsub.f32 %v70, %v72
    %v74 = vpack.c.bf16 %v73, %v73
    %v77 = vunpack.c.l.b16 %v66
    %v78 = vunpack.c.l.b16 %v67
    %v79 = vpack.c.b16 %v78, %v77
    %vm81 = vcmask 130048
    %v83 = vsel %vm81, %v71, 0
    %85 = vmatprep.subr.bf16.mxu0 0
    %86 = vmatpush1.bf16.msra.mxu0 %v79
    %87 = vmatprep.subr.bf16.mxu0 0
    %88 = vmatpush1.bf16.msra.mxu0 0
    %89 = vmatprep.subr.bf16.mxu0 0
    %90 = vmatpush1.bf16.msra.mxu0 0
    %91 = vmatprep.subr.bf16.mxu0 0
    %92 = vmatpush1.bf16.msra.mxu0 0
    %93 = vmatprep.subr.bf16.mxu0 0
    %94 = vmatpush1.bf16.msra.mxu0 0
    %95 = vmatprep.subr.bf16.mxu0 0
    %96 = vmatpush1.bf16.msra.mxu0 0
    %97 = vmatprep.subr.bf16.mxu0 0
    %98 = vmatpush1.bf16.msra.mxu0 0
    %99 = vmatprep.subr.bf16.mxu0 0
    %100 = vmatpush1.bf16.msra.mxu0 0
    %101 = vmatprep.subr.bf16.mxu0 0
    %102 = vmatpush1.bf16.msra.mxu0 0
    %103 = vmatprep.subr.bf16.mxu0 0
    %104 = vmatpush1.bf16.msra.mxu0 0
    %105 = vmatprep.subr.bf16.mxu0 0
    %106 = vmatpush1.bf16.msra.mxu0 0
    %107 = vmatprep.subr.bf16.mxu0 0
    %108 = vmatpush1.bf16.msra.mxu0 0
    %109 = vmatprep.subr.bf16.mxu0 0
    %110 = vmatpush1.bf16.msra.mxu0 0
    %111 = vmatprep.subr.bf16.mxu0 0
    %112 = vmatpush1.bf16.msra.mxu0 0
    %113 = vmatprep.subr.bf16.mxu0 0
    %114 = vmatpush1.bf16.msra.mxu0 0
    %115 = vmatprep.subr.bf16.mxu0 0
    %116 = vmatpush1.bf16.msra.mxu0 0
    %117 = vmatprep.mubr.bf16.mxu0 0
    %118 = vmatmul.mubr.bf16.gmra.mrb[0].mxu0 %v83
    %v119 = vpop.f32.mrb[0].mxu0
    %v120 = vadd.f32 0.0, %v119
    %v121 = vpop.f32.mrb[0].mxu0
    %v122 = vpop.f32.mrb[0].mxu0
    %v123 = vpop.f32.mrb[0].mxu0
    %124 = vdwg.mxu0
    %v126 = vsel %vm81, %v68, 0
    %128 = vmatprep.subr.bf16.mxu0 0
    %129 = vmatpush1.bf16.msra.mxu0 %v79
    %130 = vmatprep.subr.bf16.mxu0 0
    %131 = vmatpush1.bf16.msra.mxu0 0
    %132 = vmatprep.subr.bf16.mxu0 0
    %133 = vmatpush1.bf16.msra.mxu0 0
    %134 = vmatprep.subr.bf16.mxu0 0
    %135 = vmatpush1.bf16.msra.mxu0 0
    %136 = vmatprep.subr.bf16.mxu0 0
    %137 = vmatpush1.bf16.msra.mxu0 0
    %138 = vmatprep.subr.bf16.mxu0 0
    %139 = vmatpush1.bf16.msra.mxu0 0
    %140 = vmatprep.subr.bf16.mxu0 0
    %141 = vmatpush1.bf16.msra.mxu0 0
    %142 = vmatprep.subr.bf16.mxu0 0
    %143 = vmatpush1.bf16.msra.mxu0 0
    %144 = vmatprep.subr.bf16.mxu0 0
    %145 = vmatpush1.bf16.msra.mxu0 0
    %146 = vmatprep.subr.bf16.mxu0 0
    %147 = vmatpush1.bf16.msra.mxu0 0
    %148 = vmatprep.subr.bf16.mxu0 0
    %149 = vmatpush1.bf16.msra.mxu0 0
    %150 = vmatprep.subr.bf16.mxu0 0
    %151 = vmatpush1.bf16.msra.mxu0 0
    %152 = vmatprep.subr.bf16.mxu0 0
    %153 = vmatpush1.bf16.msra.mxu0 0
    %154 = vmatprep.subr.bf16.mxu0 0
    %155 = vmatpush1.bf16.msra.mxu0 0
    %156 = vmatprep.subr.bf16.mxu0 0
    %157 = vmatpush1.bf16.msra.mxu0 0
    %158 = vmatprep.subr.bf16.mxu0 0
    %159 = vmatpush1.bf16.msra.mxu0 0
    %160 = vmatprep.mubr.bf16.mxu0 0
    %161 = vmatmul.mubr.bf16.gmra.mrb[0].mxu0 %v126
    %v162 = vpop.f32.mrb[0].mxu0
    %v163 = vadd.f32 %v120, %v162
    %v164 = vpop.f32.mrb[0].mxu0
    %v165 = vpop.f32.mrb[0].mxu0
    %v166 = vpop.f32.mrb[0].mxu0
    %167 = vdwg.mxu0
    %v169 = vsel %vm81, %v74, 0
    %171 = vmatprep.subr.bf16.mxu0 0
    %172 = vmatpush1.bf16.msra.mxu0 %v79
    %173 = vmatprep.subr.bf16.mxu0 0
    %174 = vmatpush1.bf16.msra.mxu0 0
    %175 = vmatprep.subr.bf16.mxu0 0
    %176 = vmatpush1.bf16.msra.mxu0 0
    %177 = vmatprep.subr.bf16.mxu0 0
    %178 = vmatpush1.bf16.msra.mxu0 0
    %179 = vmatprep.subr.bf16.mxu0 0
    %180 = vmatpush1.bf16.msra.mxu0 0
    %181 = vmatprep.subr.bf16.mxu0 0
    %182 = vmatpush1.bf16.msra.mxu0 0
    %183 = vmatprep.subr.bf16.mxu0 0
    %184 = vmatpush1.bf16.msra.mxu0 0
    %185 = vmatprep.subr.bf16.mxu0 0
    %186 = vmatpush1.bf16.msra.mxu0 0
    %187 = vmatprep.subr.bf16.mxu0 0
    %188 = vmatpush1.bf16.msra.mxu0 0
    %189 = vmatprep.subr.bf16.mxu0 0
    %190 = vmatpush1.bf16.msra.mxu0 0
    %191 = vmatprep.subr.bf16.mxu0 0
    %192 = vmatpush1.bf16.msra.mxu0 0
    %193 = vmatprep.subr.bf16.mxu0 0
    %194 = vmatpush1.bf16.msra.mxu0 0
    %195 = vmatprep.subr.bf16.mxu0 0
    %196 = vmatpush1.bf16.msra.mxu0 0
    %197 = vmatprep.subr.bf16.mxu0 0
    %198 = vmatpush1.bf16.msra.mxu0 0
    %199 = vmatprep.subr.bf16.mxu0 0
    %200 = vmatpush1.bf16.msra.mxu0 0
    %201 = vmatprep.subr.bf16.mxu0 0
    %202 = vmatpush1.bf16.msra.mxu0 0
    %203 = vmatprep.mubr.bf16.mxu0 0
    %204 = vmatmul.mubr.bf16.gmra.mrb[0].mxu0 %v169
    %v205 = vpop.f32.mrb[0].mxu0
    %v206 = vadd.f32 0.0, %v205
    %v207 = vpop.f32.mrb[0].mxu0
    %v208 = vpop.f32.mrb[0].mxu0
    %v209 = vpop.f32.mrb[0].mxu0
    %210 = vdwg.mxu0
    %v211 = vadd.f32 %v163, %v206
    %v212 = vstv %s53
    %v213 = vmul.f32 %v211, %v212
    %v214 = vadd.f32 %v213, 0.0
    %v215 = vstv %s54
    %v216 = vmul.f32 %v211, %v215
    %218 = vrot.lane.b32.xlu0 %v216, 118
    %v219 = vpop.permute.xlu0 %218
    %v221 = vadd.f32 %v214, %v219
    %v222 = vstv %s59
    %v223 = vmul.f32 %v211, %v222
    %v224 = vadd.f32 %v223, 0.0
    %v225 = vstv %s60
    %v226 = vmul.f32 %v211, %v225
    %228 = vrot.lane.b32.xlu0 %v226, 118
    %v229 = vpop.permute.xlu0 %228
    %v231 = vadd.f32 %v224, %v229
    %v232 = vstv %s55
    %v233 = vmul.f32 %v211, %v232
    %235 = vrot.lane.b32.xlu0 %v233, 127
    %v236 = vpop.permute.xlu0 %235
    %v238 = vadd.f32 %v221, %v236
    %v239 = vstv %s56
    %v240 = vmul.f32 %v211, %v239
    %242 = vrot.lane.b32.xlu0 %v240, 117
    %v243 = vpop.permute.xlu0 %242
    %v245 = vadd.f32 %v238, %v243
    %v246 = vstv %s61
    %v247 = vmul.f32 %v211, %v246
    %249 = vrot.lane.b32.xlu0 %v247, 127
    %v250 = vpop.permute.xlu0 %249
    %v252 = vadd.f32 %v231, %v250
    %v253 = vstv %s62
    %v254 = vmul.f32 %v211, %v253
    %256 = vrot.lane.b32.xlu0 %v254, 117
    %v257 = vpop.permute.xlu0 %256
    %v259 = vadd.f32 %v252, %v257
    %v260 = vstv %s57
    %v261 = vmul.f32 %v211, %v260
    %263 = vrot.lane.b32.xlu0 %v261, 126
    %v264 = vpop.permute.xlu0 %263
    %v266 = vadd.f32 %v245, %v264
    %v267 = vstv %s58
    %v268 = vmul.f32 %v211, %v267
    %270 = vrot.lane.b32.xlu0 %v268, 116
    %v271 = vpop.permute.xlu0 %270
    %v273 = vadd.f32 %v266, %v271
    %v274 = vstv %s63
    %v275 = vmul.f32 %v211, %v274
    %277 = vrot.lane.b32.xlu0 %v275, 126
    %v278 = vpop.permute.xlu0 %277
    %v280 = vadd.f32 %v259, %v278
    %v281 = vstv %s64
    %v282 = vmul.f32 %v211, %v281
    %284 = vrot.lane.b32.xlu0 %v282, 116
    %v285 = vpop.permute.xlu0 %284
    %v287 = vadd.f32 %v280, %v285
    %vm288 = vcmask 64512
    %289 = vst.msk [vmem:[#allocation8] sm:$0xff] %vm288, %v273
    %290 = vst.msk [vmem:[#allocation9] sm:$0xff] %vm288, %v287
    %v291 = vld [vmem:[%s4] sm:$0xf]
    %v292 = vpack.c.bf16 %v273, %v273
    %v293 = vunpack.c.l.bf16 %v292
    %v294 = vsub.f32 %v273, %v293
    %v295 = vpack.c.bf16 %v294, %v294
    %v296 = vunpack.c.l.bf16 %v295
    %v297 = vsub.f32 %v294, %v296
    %v298 = vpack.c.bf16 %v297, %v297
    %v300 = vsel %vm288, %v295, 0
    %vm302 = vcmask 1043456
    %v304 = vsel %vm302, %v291, 0
    %306 = vmatprep.subr.bf16.mxu0 0
    %307 = vmatpush1.bf16.msra.mxu0 %v304
    %308 = vmatprep.subr.bf16.mxu0 0
    %309 = vmatpush1.bf16.msra.mxu0 0
    %310 = vmatprep.subr.bf16.mxu0 0
    %311 = vmatpush1.bf16.msra.mxu0 0
    %312 = vmatprep.subr.bf16.mxu0 0
    %313 = vmatpush1.bf16.msra.mxu0 0
    %314 = vmatprep.subr.bf16.mxu0 0
    %315 = vmatpush1.bf16.msra.mxu0 0
    %316 = vmatprep.subr.bf16.mxu0 0
    %317 = vmatpush1.bf16.msra.mxu0 0
    %318 = vmatprep.subr.bf16.mxu0 0
    %319 = vmatpush1.bf16.msra.mxu0 0
    %320 = vmatprep.subr.bf16.mxu0 0
    %321 = vmatpush1.bf16.msra.mxu0 0
    %322 = vmatprep.subr.bf16.mxu0 0
    %323 = vmatpush1.bf16.msra.mxu0 0
    %324 = vmatprep.subr.bf16.mxu0 0
    %325 = vmatpush1.bf16.msra.mxu0 0
    %326 = vmatprep.subr.bf16.mxu0 0
    %327 = vmatpush1.bf16.msra.mxu0 0
    %328 = vmatprep.subr.bf16.mxu0 0
    %329 = vmatpush1.bf16.msra.mxu0 0
    %330 = vmatprep.subr.bf16.mxu0 0
    %331 = vmatpush1.bf16.msra.mxu0 0
    %332 = vmatprep.subr.bf16.mxu0 0
    %333 = vmatpush1.bf16.msra.mxu0 0
    %334 = vmatprep.subr.bf16.mxu0 0
    %335 = vmatpush1.bf16.msra.mxu0 0
    %336 = vmatprep.subr.bf16.mxu0 0
    %337 = vmatpush1.bf16.msra.mxu0 0
    %338 = vmatprep.mubr.bf16.mxu0 0
    %339 = vmatmul.mubr.bf16.gmra.mrb[0].mxu0 %v300
    %v340 = vpop.f32.mrb[0].mxu0
    %v341 = vadd.f32 0.0, %v340
    %v342 = vpop.f32.mrb[0].mxu0
    %v343 = vpop.f32.mrb[0].mxu0
    %v344 = vpop.f32.mrb[0].mxu0
    %345 = vdwg.mxu0
    %v347 = vsel %vm288, %v292, 0
    %349 = vmatprep.subr.bf16.mxu0 0
    %350 = vmatpush1.bf16.msra.mxu0 %v304
    %351 = vmatprep.subr.bf16.mxu0 0
    %352 = vmatpush1.bf16.msra.mxu0 0
    %353 = vmatprep.subr.bf16.mxu0 0
    %354 = vmatpush1.bf16.msra.mxu0 0
    %355 = vmatprep.subr.bf16.mxu0 0
    %356 = vmatpush1.bf16.msra.mxu0 0
    %357 = vmatprep.subr.bf16.mxu0 0
    %358 = vmatpush1.bf16.msra.mxu0 0
    %359 = vmatprep.subr.bf16.mxu0 0
    %360 = vmatpush1.bf16.msra.mxu0 0
    %361 = vmatprep.subr.bf16.mxu0 0
    %362 = vmatpush1.bf16.msra.mxu0 0
    %363 = vmatprep.subr.bf16.mxu0 0
    %364 = vmatpush1.bf16.msra.mxu0 0
    %365 = vmatprep.subr.bf16.mxu0 0
    %366 = vmatpush1.bf16.msra.mxu0 0
    %367 = vmatprep.subr.bf16.mxu0 0
    %368 = vmatpush1.bf16.msra.mxu0 0
    %369 = vmatprep.subr.bf16.mxu0 0
    %370 = vmatpush1.bf16.msra.mxu0 0
    %371 = vmatprep.subr.bf16.mxu0 0
    %372 = vmatpush1.bf16.msra.mxu0 0
    %373 = vmatprep.subr.bf16.mxu0 0
    %374 = vmatpush1.bf16.msra.mxu0 0
    %375 = vmatprep.subr.bf16.mxu0 0
    %376 = vmatpush1.bf16.msra.mxu0 0
    %377 = vmatprep.subr.bf16.mxu0 0
    %378 = vmatpush1.bf16.msra.mxu0 0
    %379 = vmatprep.subr.bf16.mxu0 0
    %380 = vmatpush1.bf16.msra.mxu0 0
    %381 = vmatprep.mubr.bf16.mxu0 0
    %382 = vmatmul.mubr.bf16.gmra.mrb[0].mxu0 %v347
    %v383 = vpop.f32.mrb[0].mxu0
    %v384 = vadd.f32 %v341, %v383
    %v385 = vpop.f32.mrb[0].mxu0
    %v386 = vpop.f32.mrb[0].mxu0
    %v387 = vpop.f32.mrb[0].mxu0
    %388 = vdwg.mxu0
    %v390 = vsel %vm288, %v298, 0
    %392 = vmatprep.subr.bf16.mxu0 0
    %393 = vmatpush1.bf16.msra.mxu0 %v304
    %394 = vmatprep.subr.bf16.mxu0 0
    %395 = vmatpush1.bf16.msra.mxu0 0
    %396 = vmatprep.subr.bf16.mxu0 0
    %397 = vmatpush1.bf16.msra.mxu0 0
    %398 = vmatprep.subr.bf16.mxu0 0
    %399 = vmatpush1.bf16.msra.mxu0 0
    %400 = vmatprep.subr.bf16.mxu0 0
    %401 = vmatpush1.bf16.msra.mxu0 0
    %402 = vmatprep.subr.bf16.mxu0 0
    %403 = vmatpush1.bf16.msra.mxu0 0
    %404 = vmatprep.subr.bf16.mxu0 0
    %405 = vmatpush1.bf16.msra.mxu0 0
    %406 = vmatprep.subr.bf16.mxu0 0
    %407 = vmatpush1.bf16.msra.mxu0 0
    %408 = vmatprep.subr.bf16.mxu0 0
    %409 = vmatpush1.bf16.msra.mxu0 0
    %410 = vmatprep.subr.bf16.mxu0 0
    %411 = vmatpush1.bf16.msra.mxu0 0
    %412 = vmatprep.subr.bf16.mxu0 0
    %413 = vmatpush1.bf16.msra.mxu0 0
    %414 = vmatprep.subr.bf16.mxu0 0
    %415 = vmatpush1.bf16.msra.mxu0 0
    %416 = vmatprep.subr.bf16.mxu0 0
    %417 = vmatpush1.bf16.msra.mxu0 0
    %418 = vmatprep.subr.bf16.mxu0 0
    %419 = vmatpush1.bf16.msra.mxu0 0
    %420 = vmatprep.subr.bf16.mxu0 0
    %421 = vmatpush1.bf16.msra.mxu0 0
    %422 = vmatprep.subr.bf16.mxu0 0
    %423 = vmatpush1.bf16.msra.mxu0 0
    %424 = vmatprep.mubr.bf16.mxu0 0
    %425 = vmatmul.mubr.bf16.gmra.mrb[0].mxu0 %v390
    %v426 = vpop.f32.mrb[0].mxu0
    %v427 = vadd.f32 0.0, %v426
    %v428 = vpop.f32.mrb[0].mxu0
    %v429 = vpop.f32.mrb[0].mxu0
    %v430 = vpop.f32.mrb[0].mxu0
    %431 = vdwg.mxu0
    %v432 = vadd.f32 %v384, %v427
    %v433 = vmul.f32 %v432, %v212
    %v434 = vadd.f32 %v433, 0.0
    %v435 = vmul.f32 %v432, %v215
    %437 = vrot.lane.b32.xlu0 %v435, 122
    %v438 = vpop.permute.xlu0 %437
    %v440 = vadd.f32 %v434, %v438
    %v441 = vmul.f32 %v432, %v222
    %v442 = vadd.f32 %v441, 0.0
    %v443 = vmul.f32 %v432, %v225
    %445 = vrot.lane.b32.xlu0 %v443, 122
    %v446 = vpop.permute.xlu0 %445
    %v448 = vadd.f32 %v442, %v446
    %v449 = vmul.f32 %v432, %v232
    %451 = vrot.lane.b32.xlu0 %v449, 127
    %v452 = vpop.permute.xlu0 %451
    %v454 = vadd.f32 %v440, %v452
    %v455 = vmul.f32 %v432, %v239
    %457 = vrot.lane.b32.xlu0 %v455, 121
    %v458 = vpop.permute.xlu0 %457
    %v460 = vadd.f32 %v454, %v458
    %v461 = vmul.f32 %v432, %v246
    %463 = vrot.lane.b32.xlu0 %v461, 127
    %v464 = vpop.permute.xlu0 %463
    %v466 = vadd.f32 %v448, %v464
    %v467 = vmul.f32 %v432, %v253
    %469 = vrot.lane.b32.xlu0 %v467, 121
    %v470 = vpop.permute.xlu0 %469
    %v472 = vadd.f32 %v466, %v470
    %v473 = vmul.f32 %v432, %v260
    %475 = vrot.lane.b32.xlu0 %v473, 126
    %v476 = vpop.permute.xlu0 %475
    %v478 = vadd.f32 %v460, %v476
    %v479 = vmul.f32 %v432, %v267
    %481 = vrot.lane.b32.xlu0 %v479, 120
    %v482 = vpop.permute.xlu0 %481
    %v484 = vadd.f32 %v478, %v482
    %v485 = vmul.f32 %v432, %v274
    %487 = vrot.lane.b32.xlu0 %v485, 126
    %v488 = vpop.permute.xlu0 %487
    %v490 = vadd.f32 %v472, %v488
    %v491 = vmul.f32 %v432, %v281
    %493 = vrot.lane.b32.xlu0 %v491, 120
    %v494 = vpop.permute.xlu0 %493
    %v496 = vadd.f32 %v490, %v494
    %vm497 = vcmask 31744
    %498 = vst.msk [vmem:[%s7] sm:$0xff] %vm497, %v484
    %499 = vst.msk [vmem:[%s8] sm:$0xff] %vm497, %v496
    // Predicated region
    $region30: #{tpu_custom_call.1} parent=1 // pred_check
      _
    $region31: #{tpu_custom_call.1} parent=1 // pred_check_branch
      %501 = sbr.rel (0) target = $region33
    $region32: #{tpu_custom_call.1} parent=1 // pred_region
      %s503 = ssub.s32 128, 128
      %504 = vsyncadd [#allocation5], %s503
      %s506 = sshll.u32 [#allocation8], 4
      %s507 = int_to_ptr.vmem [resolvable:$true] %s506
      %509 = dma.vmem_to_hbm [thread:$0]  %s507, 128, %s5, [#allocation5]
    $region33: #{tpu_custom_call.1} parent=1 // pred_fallthru
      _
    // Predicated region
    $region34: #{tpu_custom_call.1} parent=1 // pred_check
      _
    $region35: #{tpu_custom_call.1} parent=1 // pred_check_branch
      %511 = sbr.rel (0) target = $region37
    $region36: #{tpu_custom_call.1} parent=1 // pred_region
      %s513 = ssub.s32 128, 128
      %514 = vsyncadd [#allocation10], %s513
      %s516 = sshll.u32 [#allocation9], 4
      %s517 = int_to_ptr.vmem [resolvable:$true] %s516
      %519 = dma.vmem_to_hbm [thread:$0]  %s517, 128, %s6, [#allocation10]
    $region37: #{tpu_custom_call.1} parent=1 // pred_fallthru
      _
    // Predicated region
    $region38: #{tpu_custom_call.1} parent=1 // pred_check
      _
    $region39: #{tpu_custom_call.1} parent=1 // pred_check_branch
      %521 = sbr.rel (0) target = $region41
    $region40: #{tpu_custom_call.1} parent=1 // pred_region
      _
    $region41: #{tpu_custom_call.1} parent=1 // pred_fallthru
      _
    // Predicated region
    $region42: #{tpu_custom_call.1} parent=1 // pred_check
      _
    $region43: #{tpu_custom_call.1} parent=1 // pred_check_branch
      %523 = sbr.rel (0) target = $region45
    $region44: #{tpu_custom_call.1} parent=1 // pred_region
      _
    $region45: #{tpu_custom_call.1} parent=1 // pred_fallthru
      _
    // Predicated region
    $region46: #{tpu_custom_call.1} parent=1 // pred_check
      _
    $region47: #{tpu_custom_call.1} parent=1 // pred_check_branch
      %525 = sbr.rel (0) target = $region49
    $region48: #{tpu_custom_call.1} parent=1 // pred_region
      %526 = dma.done [#allocation5], 128
    $region49: #{tpu_custom_call.1} parent=1 // pred_fallthru
      _
    // Predicated region
    $region50: #{tpu_custom_call.1} parent=1 // pred_check
      _
    $region51: #{tpu_custom_call.1} parent=1 // pred_check_branch
      %528 = sbr.rel (0) target = $region53
    $region52: #{tpu_custom_call.1} parent=1 // pred_region
      %529 = dma.done [#allocation10], 128
    $region53: #{tpu_custom_call.1} parent=1 // pred_fallthru
      _
    // Predicated region
    $region54: #{tpu_custom_call.1} parent=1 // pred_check
      _
    $region55: #{tpu_custom_call.1} parent=1 // pred_check_branch
      %531 = sbr.rel (0) target = $region57
    $region56: #{tpu_custom_call.1} parent=1 // pred_region
      _
    $region57: #{tpu_custom_call.1} parent=1 // pred_fallthru
      _
    // Predicated region
    $region58: #{tpu_custom_call.1} parent=1 // pred_check
      _
    $region59: #{tpu_custom_call.1} parent=1 // pred_check_branch
      %533 = sbr.rel (0) target = $region61
    $region60: #{tpu_custom_call.1} parent=1 // pred_region
      _
    $region61: #{tpu_custom_call.1} parent=1 // pred_fallthru
      _
    %534 = vsyncpa [#allocation4], 1
    %535 = vsyncpa [#allocation5], 1
    %536 = vsyncpa [#allocation10], 1
    %537 = vsyncpa [#allocation6], 1

</llo_original>
